<compile_context>
chip_gen: v5e
topology: v5e:2x2
jax: 0.10.0
libtpu: 0.0.40
codegen_flags: <defaults>
</compile_context>

<pallas_src>
import functools

import numpy as np
import jax
import jax.numpy as jnp
from jax.experimental import pallas as pl
from jax.experimental.pallas import tpu as pltpu

INPUT_SIZE = 6
NUM_CLASSES = 4
H1 = 25
H2 = 10

_LANE = 128
_MAX_BATCH_TILE = 32768   # columns; ~15 MiB peak VMEM at this tile size


def _round_up(a, m):
    return ((a + m - 1) // m) * m


def _default_ew_dtype():
    """bf16 elementwise only on generations whose VPU handles bf16 (v6e/v7x)."""
    try:
        kind = jax.devices()[0].device_kind.lower()
    except Exception:
        return jnp.float32
    for old in ("v2", "v3", "v4", "v5"):
        if old in kind:
            return jnp.float32
    return jnp.bfloat16


def _choose_batch_tile(batch):
    """Adaptive tile: multiple of 128, capped, >=2 grid steps when possible,
    and sized ~B/n_tiles so tail-pad waste stays bounded."""
    b_pad_min = _round_up(max(batch, 1), _LANE)
    n_tiles = max(2, pl.cdiv(b_pad_min, _MAX_BATCH_TILE))
    bt = min(_round_up(pl.cdiv(b_pad_min, n_tiles), _LANE), _MAX_BATCH_TILE)
    b_pad = _round_up(batch, bt)
    return bt, b_pad


def _dnn_kernel(x_ref, w1_ref, w2_ref, b2_ref, w3_ref, b3_ref, o_ref, *,
                ew_dtype, precision):
    # Fused 3-layer MLP on one feature-major batch tile.
    #   x_ref : (7, BT)   6 features + constant-ones row (layer-1 bias folded)
    #   w1_ref: (25, 7)   [W1 | b1]
    # MXU accumulates in f32; bias-add / ReLU run in ew_dtype (bf16 on v6e/v7x).
    x = x_ref[...]

    h1 = jnp.dot(w1_ref[...], x, preferred_element_type=jnp.float32,
                 precision=precision)
    h1 = jnp.maximum(h1.astype(ew_dtype), 0).astype(w2_ref.dtype)      # (25, BT)

    h2 = jnp.dot(w2_ref[...], h1, preferred_element_type=jnp.float32,
                 precision=precision)
    h2 = jnp.maximum(h2.astype(ew_dtype) + b2_ref[...], 0).astype(w3_ref.dtype)

    y = jnp.dot(w3_ref[...], h2, preferred_element_type=jnp.float32,
                precision=precision)
    o_ref[...] = (y.astype(ew_dtype) + b3_ref[...]).astype(o_ref.dtype)


def dnn_forward_fm(xt, params, *, compute_dtype=jnp.bfloat16, ew_dtype=None,
                   out_dtype=jnp.bfloat16, precision=None):
    """Feature-major forward: xt (INPUT_SIZE, B) -> logits (NUM_CLASSES, B).

    No wrapper-side transposes: the batch axis stays lane-dense for both the
    input and the output HBM streams.
    """
    w1, b1, w2, b2, w3, b3 = params
    if ew_dtype is None:
        ew_dtype = _default_ew_dtype()

    B = xt.shape[1]
    bt, b_pad = _choose_batch_tile(B)

    # Pad the batch (lane) axis to a whole number of tiles, then append a
    # constant-ones row so layer-1's bias rides along the MXU contraction dim.
    xt = xt.astype(compute_dtype)
    if b_pad != B:
        xt = jnp.pad(xt, ((0, 0), (0, b_pad - B)))
    x_aug = jnp.concatenate([xt, jnp.ones((1, b_pad), compute_dtype)], axis=0)

    w1_aug = jnp.concatenate([w1, b1], axis=1).astype(compute_dtype)   # (25, 7)
    w2c = w2.astype(compute_dtype)
    w3c = w3.astype(compute_dtype)
    b2c = b2.astype(ew_dtype)
    b3c = b3.astype(ew_dtype)

    const = lambda shape: pl.BlockSpec(shape, lambda i: (0, 0))
    kernel = functools.partial(_dnn_kernel, ew_dtype=ew_dtype,
                               precision=precision)

    flops = 2 * (INPUT_SIZE * H1 + H1 * H2 + H2 * NUM_CLASSES) * b_pad
    bytes_accessed = (
        x_aug.size * np.dtype(compute_dtype).itemsize
        + NUM_CLASSES * b_pad * np.dtype(out_dtype).itemsize
        + sum(int(a.size) * a.dtype.itemsize
              for a in (w1_aug, w2c, b2c, w3c, b3c)))

    yt = pl.pallas_call(
        kernel,
        out_shape=jax.ShapeDtypeStruct((NUM_CLASSES, b_pad), out_dtype),
        grid=(b_pad // bt,),
        in_specs=[
            pl.BlockSpec((INPUT_SIZE + 1, bt), lambda i: (0, i)),  # x tile
            const(w1_aug.shape),
            const(w2c.shape), const(b2c.shape),
            const(w3c.shape), const(b3c.shape),
        ],
        out_specs=pl.BlockSpec((NUM_CLASSES, bt), lambda i: (0, i)),
        compiler_params=pltpu.CompilerParams(
            dimension_semantics=("parallel",),      # shard batch tiles on 2 TCs
            vmem_limit_bytes=32 * 1024 * 1024,      # > v5e's 16 MiB scoped default
        ),
        cost_estimate=pl.CostEstimate(
            flops=flops, transcendentals=0, bytes_accessed=bytes_accessed),
    )(x_aug, w1_aug, w2c, b2c, w3c, b3c)

    return yt if b_pad == B else yt[:, :B]


def dnn_forward(x, params, **kwargs):
    """Torch-contract forward: x (B, INPUT_SIZE) -> logits (B, NUM_CLASSES).

    The transposes here are layout plumbing for the batch-major contract; use
    `dnn_forward_fm` directly when producer/consumer can be feature-major.
    """
    return dnn_forward_fm(x.T, params, **kwargs).T


def init_params(key):
    """Deterministic init mimicking torch.nn.Linear (uniform +/- 1/sqrt(fan_in)),
    stored in PyTorch layout: W (out, in), b (out, 1)."""
    def linear(key, fan_in, fan_out):
        kw, kb = jax.random.split(key)
        bound = 1.0 / jnp.sqrt(fan_in)
        w = jax.random.uniform(kw, (fan_out, fan_in), jnp.float32, -bound, bound)
        b = jax.random.uniform(kb, (fan_out, 1), jnp.float32, -bound, bound)
        return w, b

    k1, k2, k3 = jax.random.split(key, 3)
    w1, b1 = linear(k1, INPUT_SIZE, H1)
    w2, b2 = linear(k2, H1, H2)
    w3, b3 = linear(k3, H2, NUM_CLASSES)
    return (w1, b1, w2, b2, w3, b3)


def dnn_reference(x, params):
    """Pure-JAX f32 reference (matches the PyTorch forward)."""
    w1, b1, w2, b2, w3, b3 = params
    hp = jax.lax.Precision.HIGHEST
    h1 = jnp.maximum(jnp.dot(x, w1.T, precision=hp) + b1.T, 0.0)
    h2 = jnp.maximum(jnp.dot(h1, w2.T, precision=hp) + b2.T, 0.0)
    return jnp.dot(h2, w3.T, precision=hp) + b3.T


if __name__ == "__main__":
    key = jax.random.PRNGKey(0)
    k_params, k_x = jax.random.split(key)

    params = init_params(k_params)
    batch = 200   # small; not a multiple of 128 -> exercises padding + 2-tile grid
    x = jax.random.normal(k_x, (batch, INPUT_SIZE), jnp.float32)

    ref = dnn_reference(x, params)

    # Default bf16-operand / bf16-logits fast path (torch batch-major contract).
    fwd = jax.jit(dnn_forward)
    out = jax.block_until_ready(fwd(x, params))
    assert out.shape == (batch, NUM_CLASSES)
    err = float(jnp.max(jnp.abs(out.astype(jnp.float32) - ref)))
    assert err < 5e-2, f"bf16 path max abs err = {err}"

    # Feature-major path (no wrapper transposes), full-f32 with HIGHEST precision.
    fwd_fm32 = jax.jit(functools.partial(
        dnn_forward_fm, compute_dtype=jnp.float32, ew_dtype=jnp.float32,
        out_dtype=jnp.float32, precision=jax.lax.Precision.HIGHEST))
    out_fm = jax.block_until_ready(fwd_fm32(x.T, params))
    assert out_fm.shape == (NUM_CLASSES, batch)
    err32 = float(jnp.max(jnp.abs(out_fm.T - ref)))
    assert err32 < 1e-4, f"f32 path max abs err = {err32}"

    print("KERNEL_OK")
</pallas_src>

<mosaic_0001>
module attributes {stable_mosaic.version = 11 : i64} {
  func.func @_dnn_kernel(%arg0: i32, %arg1: memref<7x128xbf16, #tpu.memory_space<vmem>>, %arg2: memref<25x7xbf16, #tpu.memory_space<vmem>>, %arg3: memref<10x25xbf16, #tpu.memory_space<vmem>>, %arg4: memref<10x1xbf16, #tpu.memory_space<vmem>>, %arg5: memref<4x10xbf16, #tpu.memory_space<vmem>>, %arg6: memref<4x1xbf16, #tpu.memory_space<vmem>>, %arg7: memref<4x128xbf16, #tpu.memory_space<vmem>>) attributes {dimension_semantics = [#tpu.dimension_semantics<parallel>], iteration_bounds = array<i64: 2>, scalar_prefetch = 0 : i64, scratch_operands = 0 : i64, tpu.core_type = #tpu.core_type<tc>, window_params = [{transform_indices = @transform_0, window_bounds = array<i64: 7, 128>}, {pipeline_mode = #tpu.pipeline_mode<synchronous>, transform_indices = @transform_1, window_bounds = array<i64: 25, 7>}, {pipeline_mode = #tpu.pipeline_mode<synchronous>, transform_indices = @transform_2, window_bounds = array<i64: 10, 25>}, {pipeline_mode = #tpu.pipeline_mode<synchronous>, transform_indices = @transform_3, window_bounds = array<i64: 10, 1>}, {pipeline_mode = #tpu.pipeline_mode<synchronous>, transform_indices = @transform_4, window_bounds = array<i64: 4, 10>}, {pipeline_mode = #tpu.pipeline_mode<synchronous>, transform_indices = @transform_5, window_bounds = array<i64: 4, 1>}, {transform_indices = @transform_6, window_bounds = array<i64: 4, 128>}]} {
    %c0 = arith.constant 0 : index
    %c0_0 = arith.constant 0 : index
    %0 = vector.load %arg1[%c0, %c0_0] : memref<7x128xbf16, #tpu.memory_space<vmem>>, vector<7x128xbf16>
    %c0_1 = arith.constant 0 : index
    %c0_2 = arith.constant 0 : index
    %1 = vector.load %arg2[%c0_1, %c0_2] : memref<25x7xbf16, #tpu.memory_space<vmem>>, vector<25x7xbf16>
    %cst = arith.constant dense<0.000000e+00> : vector<25x128xf32>
    %2 = tpu.matmul %1, %0, %cst {dimension_numbers = #tpu.dot_dimension_numbers<[1], [0], [0], [1], [0, 0, 1, 1], [], []>} : vector<25x7xbf16>, vector<7x128xbf16>, vector<25x128xf32> -> vector<25x128xf32>
    %3 = arith.truncf %2 : vector<25x128xf32> to vector<25x128xbf16>
    %cst_3 = arith.constant 0.000000e+00 : bf16
    %4 = vector.broadcast %cst_3 : bf16 to vector<25x128xbf16>
    %5 = arith.maximumf %3, %4 : vector<25x128xbf16>
    %c0_4 = arith.constant 0 : index
    %c0_5 = arith.constant 0 : index
    %6 = vector.load %arg3[%c0_4, %c0_5] : memref<10x25xbf16, #tpu.memory_space<vmem>>, vector<10x25xbf16>
    %cst_6 = arith.constant dense<0.000000e+00> : vector<10x128xf32>
    %7 = tpu.matmul %6, %5, %cst_6 {dimension_numbers = #tpu.dot_dimension_numbers<[1], [0], [0], [1], [0, 0, 1, 1], [], []>} : vector<10x25xbf16>, vector<25x128xbf16>, vector<10x128xf32> -> vector<10x128xf32>
    %8 = arith.truncf %7 : vector<10x128xf32> to vector<10x128xbf16>
    %c0_7 = arith.constant 0 : index
    %c0_8 = arith.constant 0 : index
    %9 = vector.load %arg4[%c0_7, %c0_8] : memref<10x1xbf16, #tpu.memory_space<vmem>>, vector<10x1xbf16>
    %10 = vector.broadcast %9 : vector<10x1xbf16> to vector<10x128xbf16>
    %11 = arith.addf %8, %10 : vector<10x128xbf16>
    %cst_9 = arith.constant 0.000000e+00 : bf16
    %12 = vector.broadcast %cst_9 : bf16 to vector<10x128xbf16>
    %13 = arith.maximumf %11, %12 : vector<10x128xbf16>
    %c0_10 = arith.constant 0 : index
    %c0_11 = arith.constant 0 : index
    %14 = vector.load %arg5[%c0_10, %c0_11] : memref<4x10xbf16, #tpu.memory_space<vmem>>, vector<4x10xbf16>
    %cst_12 = arith.constant dense<0.000000e+00> : vector<4x128xf32>
    %15 = tpu.matmul %14, %13, %cst_12 {dimension_numbers = #tpu.dot_dimension_numbers<[1], [0], [0], [1], [0, 0, 1, 1], [], []>} : vector<4x10xbf16>, vector<10x128xbf16>, vector<4x128xf32> -> vector<4x128xf32>
    %16 = arith.truncf %15 : vector<4x128xf32> to vector<4x128xbf16>
    %c0_13 = arith.constant 0 : index
    %c0_14 = arith.constant 0 : index
    %17 = vector.load %arg6[%c0_13, %c0_14] : memref<4x1xbf16, #tpu.memory_space<vmem>>, vector<4x1xbf16>
    %18 = vector.broadcast %17 : vector<4x1xbf16> to vector<4x128xbf16>
    %19 = arith.addf %16, %18 : vector<4x128xbf16>
    %c0_15 = arith.constant 0 : index
    %c0_16 = arith.constant 0 : index
    %20 = vector.load %arg7[%c0_15, %c0_16] : memref<4x128xbf16, #tpu.memory_space<vmem>>, vector<4x128xbf16>
    tpu.vector_store %arg7[%c0_15, %c0_16], %19 {strides = array<i32>} : memref<4x128xbf16, #tpu.memory_space<vmem>>, vector<4x128xbf16>,
    return
  }
  func.func @transform_0(%arg0: i32) -> (i32, i32) {
    %c0_i32 = arith.constant 0 : i32
    %c0_i32_0 = arith.constant 0 : i32
    return %c0_i32, %arg0 : i32, i32
  }
  func.func @transform_1(%arg0: i32) -> (i32, i32) {
    %c0_i32 = arith.constant 0 : i32
    %c0_i32_0 = arith.constant 0 : i32
    %c0_i32_1 = arith.constant 0 : i32
    return %c0_i32, %c0_i32_0 : i32, i32
  }
  func.func @transform_2(%arg0: i32) -> (i32, i32) {
    %c0_i32 = arith.constant 0 : i32
    %c0_i32_0 = arith.constant 0 : i32
    %c0_i32_1 = arith.constant 0 : i32
    return %c0_i32, %c0_i32_0 : i32, i32
  }
  func.func @transform_3(%arg0: i32) -> (i32, i32) {
    %c0_i32 = arith.constant 0 : i32
    %c0_i32_0 = arith.constant 0 : i32
    %c0_i32_1 = arith.constant 0 : i32
    return %c0_i32, %c0_i32_0 : i32, i32
  }
  func.func @transform_4(%arg0: i32) -> (i32, i32) {
    %c0_i32 = arith.constant 0 : i32
    %c0_i32_0 = arith.constant 0 : i32
    %c0_i32_1 = arith.constant 0 : i32
    return %c0_i32, %c0_i32_0 : i32, i32
  }
  func.func @transform_5(%arg0: i32) -> (i32, i32) {
    %c0_i32 = arith.constant 0 : i32
    %c0_i32_0 = arith.constant 0 : i32
    %c0_i32_1 = arith.constant 0 : i32
    return %c0_i32, %c0_i32_0 : i32, i32
  }
  func.func @transform_6(%arg0: i32) -> (i32, i32) {
    %c0_i32 = arith.constant 0 : i32
    %c0_i32_0 = arith.constant 0 : i32
    return %c0_i32, %arg0 : i32, i32
  }
}

</mosaic_0001>

<llo_original>
// kernel: dnn_forward.1
$region0: #{dnn_forward.1}
  #allocation0 [shape = 'u32[]', space=smem, size = 0x4, offset = 0x4, fixed_abs, tag = 'smem constant byte address 0x4 - core index']
  #allocation1 [shape = 'u32[72,128]{1,0:T(1,128)}', space=vmem, size = 0x9000, scoped, tag = 'internal scratch']
  %s0 = inlined_call_operand.vmem [shape: bf16[7,256], index: 0, kind: input, shape index: {}]
  %s1 = inlined_call_operand.vmem [shape: bf16[25,7], index: 1, kind: input, shape index: {}]
  %s2 = inlined_call_operand.vmem [shape: bf16[10,25], index: 2, kind: input, shape index: {}]
  %s3 = inlined_call_operand.vmem [shape: bf16[10,1], index: 3, kind: input, shape index: {}]
  %s4 = inlined_call_operand.vmem [shape: bf16[4,10], index: 4, kind: input, shape index: {}]
  %s5 = inlined_call_operand.vmem [shape: bf16[4,1], index: 5, kind: input, shape index: {}]
  %s6 = inlined_call_operand.vmem [shape: bf16[4,256], index: 6, kind: output, shape index: {}]
  %s7 = sld [smem:[#allocation0]]
  $region57: #{dnn_forward.1} parent=0
    _
  %s9 = ssub.s32 1, %s7
  %s10 = scalar_select 0, %s9, %s7
  loop: start=0, step=1, limit=4
  $region2: #{dnn_forward.1} parent=0 // loop_pre_header
    _
  $region3: #{dnn_forward.1} parent=0 // loop_header
    %s12 = sphi 0, %s16
    %p13 = scmp.ge.s32.totalorder %s12, 4
    %s22 = sphi 0, %s24
    %s25 = sphi 0, %s22
    %s26 = sphi 0, %s25
    %s42 = sphi 0, %s26
    %s46 = sphi 0, %s46
    %s48 = sphi 0, %s46
    %s49 = sphi 0, %s48
    %s63 = sphi 0, %s49
    %s67 = sphi 0, %s67
    %s69 = sphi 0, %s67
    %s70 = sphi 0, %s69
    %s84 = sphi 0, %s70
    %s88 = sphi 0, %s88
    %s90 = sphi 0, %s88
    %s91 = sphi 0, %s90
    %s105 = sphi 0, %s91
    %s109 = sphi 0, %s109
    %s111 = sphi 0, %s109
    %s112 = sphi 0, %s111
    %s126 = sphi 0, %s112
    %s130 = sphi 0, %s130
    %s132 = sphi 0, %s130
    %s133 = sphi 0, %s132
    %s147 = sphi 0, %s133
    %s153 = sphi 0, %s155
    %s156 = sphi 0, %s153
    %s157 = sphi 0, %s156
    %s173 = sphi 0, %s157
  $region4: #{dnn_forward.1} parent=0 // loop_header_branch
    %15 = sbr.rel (%p13) target = $region8
  $region5: #{dnn_forward.1} parent=0 // loop_body
    %s17 = ssub.s32 %s12, 1
    %s18 = ssub.s32 %s12, 2
    %s19 = sadd.s32 %s12, 1
    %s20 = ssub.s32 %s12, %s19
    %p21 = scmp.eq.s32.totalorder %s20, 0
    %s23 = sadd.s32 %s22, 1
    %s24 = scalar_select %p21, %s22, %s23
    %p27 = pneg %p21
    %p28 = scmp.eq.s32.totalorder %s12, 1
    %p29 = por %p27, %p28
    %p30 = scmp.ne.s32.totalorder %s22, %s25
    %p31 = scmp.eq.s32.totalorder %s12, 0
    %p32 = por %p30, %p31
    %p33 = scmp.ne.s32.totalorder %s22, %s25
    %p34 = scmp.eq.s32.totalorder %s17, 1
    %p35 = por %p33, %p34
    %p36 = scmp.ne.s32.totalorder %s25, %s26
    %p37 = scmp.eq.s32.totalorder %s17, 0
    %p38 = por %p36, %p37
    %p39 = scmp.ne.s32.totalorder %s25, %s26
    %p40 = scmp.eq.s32.totalorder %s18, 1
    %p41 = por %p39, %p40
    %p43 = scmp.ne.s32.totalorder %s26, %s42
    %p44 = scmp.eq.s32.totalorder %s18, 0
    %p45 = por %p43, %p44
    %s47 = sadd.s32 %s46, 1
    %p50 = scmp.eq.s32.totalorder %s12, 1
    %p51 = scmp.ne.s32.totalorder %s46, %s48
    %p52 = scmp.eq.s32.totalorder %s12, 0
    %p53 = por %p51, %p52
    %p54 = scmp.ne.s32.totalorder %s46, %s48
    %p55 = scmp.eq.s32.totalorder %s17, 1
    %p56 = por %p54, %p55
    %p57 = scmp.ne.s32.totalorder %s48, %s49
    %p58 = scmp.eq.s32.totalorder %s17, 0
    %p59 = por %p57, %p58
    %p60 = scmp.ne.s32.totalorder %s48, %s49
    %p61 = scmp.eq.s32.totalorder %s18, 1
    %p62 = por %p60, %p61
    %p64 = scmp.ne.s32.totalorder %s49, %s63
    %p65 = scmp.eq.s32.totalorder %s18, 0
    %p66 = por %p64, %p65
    %s68 = sadd.s32 %s67, 1
    %p71 = scmp.eq.s32.totalorder %s12, 1
    %p72 = scmp.ne.s32.totalorder %s67, %s69
    %p73 = scmp.eq.s32.totalorder %s12, 0
    %p74 = por %p72, %p73
    %p75 = scmp.ne.s32.totalorder %s67, %s69
    %p76 = scmp.eq.s32.totalorder %s17, 1
    %p77 = por %p75, %p76
    %p78 = scmp.ne.s32.totalorder %s69, %s70
    %p79 = scmp.eq.s32.totalorder %s17, 0
    %p80 = por %p78, %p79
    %p81 = scmp.ne.s32.totalorder %s69, %s70
    %p82 = scmp.eq.s32.totalorder %s18, 1
    %p83 = por %p81, %p82
    %p85 = scmp.ne.s32.totalorder %s70, %s84
    %p86 = scmp.eq.s32.totalorder %s18, 0
    %p87 = por %p85, %p86
    %s89 = sadd.s32 %s88, 1
    %p92 = scmp.eq.s32.totalorder %s12, 1
    %p93 = scmp.ne.s32.totalorder %s88, %s90
    %p94 = scmp.eq.s32.totalorder %s12, 0
    %p95 = por %p93, %p94
    %p96 = scmp.ne.s32.totalorder %s88, %s90
    %p97 = scmp.eq.s32.totalorder %s17, 1
    %p98 = por %p96, %p97
    %p99 = scmp.ne.s32.totalorder %s90, %s91
    %p100 = scmp.eq.s32.totalorder %s17, 0
    %p101 = por %p99, %p100
    %p102 = scmp.ne.s32.totalorder %s90, %s91
    %p103 = scmp.eq.s32.totalorder %s18, 1
    %p104 = por %p102, %p103
    %p106 = scmp.ne.s32.totalorder %s91, %s105
    %p107 = scmp.eq.s32.totalorder %s18, 0
    %p108 = por %p106, %p107
    %s110 = sadd.s32 %s109, 1
    %p113 = scmp.eq.s32.totalorder %s12, 1
    %p114 = scmp.ne.s32.totalorder %s109, %s111
    %p115 = scmp.eq.s32.totalorder %s12, 0
    %p116 = por %p114, %p115
    %p117 = scmp.ne.s32.totalorder %s109, %s111
    %p118 = scmp.eq.s32.totalorder %s17, 1
    %p119 = por %p117, %p118
    %p120 = scmp.ne.s32.totalorder %s111, %s112
    %p121 = scmp.eq.s32.totalorder %s17, 0
    %p122 = por %p120, %p121
    %p123 = scmp.ne.s32.totalorder %s111, %s112
    %p124 = scmp.eq.s32.totalorder %s18, 1
    %p125 = por %p123, %p124
    %p127 = scmp.ne.s32.totalorder %s112, %s126
    %p128 = scmp.eq.s32.totalorder %s18, 0
    %p129 = por %p127, %p128
    %s131 = sadd.s32 %s130, 1
    %p134 = scmp.eq.s32.totalorder %s12, 1
    %p135 = scmp.ne.s32.totalorder %s130, %s132
    %p136 = scmp.eq.s32.totalorder %s12, 0
    %p137 = por %p135, %p136
    %p138 = scmp.ne.s32.totalorder %s130, %s132
    %p139 = scmp.eq.s32.totalorder %s17, 1
    %p140 = por %p138, %p139
    %p141 = scmp.ne.s32.totalorder %s132, %s133
    %p142 = scmp.eq.s32.totalorder %s17, 0
    %p143 = por %p141, %p142
    %p144 = scmp.ne.s32.totalorder %s132, %s133
    %p145 = scmp.eq.s32.totalorder %s18, 1
    %p146 = por %p144, %p145
    %p148 = scmp.ne.s32.totalorder %s133, %s147
    %p149 = scmp.eq.s32.totalorder %s18, 0
    %p150 = por %p148, %p149
    %s151 = ssub.s32 %s12, %s19
    %p152 = scmp.eq.s32.totalorder %s151, 0
    %s154 = sadd.s32 %s153, 1
    %s155 = scalar_select %p152, %s153, %s154
    %p158 = pneg %p152
    %p159 = scmp.eq.s32.totalorder %s12, 1
    %p160 = por %p158, %p159
    %p161 = scmp.ne.s32.totalorder %s153, %s156
    %p162 = scmp.eq.s32.totalorder %s12, 0
    %p163 = por %p161, %p162
    %p164 = scmp.ne.s32.totalorder %s153, %s156
    %p165 = scmp.eq.s32.totalorder %s17, 1
    %p166 = por %p164, %p165
    %p167 = scmp.ne.s32.totalorder %s156, %s157
    %p168 = scmp.eq.s32.totalorder %s17, 0
    %p169 = por %p167, %p168
    %p170 = scmp.ne.s32.totalorder %s156, %s157
    %p171 = scmp.eq.s32.totalorder %s18, 1
    %p172 = por %p170, %p171
    %p174 = scmp.ne.s32.totalorder %s157, %s173
    %p175 = scmp.eq.s32.totalorder %s18, 0
    %p176 = por %p174, %p175
    %p177 = scmp.le.s32.totalorder 1, %s12
    %p178 = scmp.lt.s32.totalorder %s12, 3
    %p179 = pnand %p177, %p178
    %p180 = pneg %p179
    // Predicated region
    $region9: #{dnn_forward.1} parent=5 // pred_check
      _
    $region10: #{dnn_forward.1} parent=5 // pred_check_branch
      %182 = sbr.rel (%p179) target = $region12
    $region11: #{dnn_forward.1} parent=5 // pred_region
      %s183 = ssub.s32 %s12, 1
      // Predicated region
      $region13: #{dnn_forward.1} parent=11 // pred_check
        %p184 = pneg %p59
      $region14: #{dnn_forward.1} parent=11 // pred_check_branch
        %186 = sbr.rel (%p184) target = $region16
      $region15: #{dnn_forward.1} parent=11 // pred_region
        _
      $region16: #{dnn_forward.1} parent=11 // pred_fallthru
        _
      // Predicated region
      $region17: #{dnn_forward.1} parent=11 // pred_check
        %p187 = pneg %p80
      $region18: #{dnn_forward.1} parent=11 // pred_check_branch
        %189 = sbr.rel (%p187) target = $region20
      $region19: #{dnn_forward.1} parent=11 // pred_region
        _
      $region20: #{dnn_forward.1} parent=11 // pred_fallthru
        _
      // Predicated region
      $region21: #{dnn_forward.1} parent=11 // pred_check
        %p190 = pneg %p101
      $region22: #{dnn_forward.1} parent=11 // pred_check_branch
        %192 = sbr.rel (%p190) target = $region24
      $region23: #{dnn_forward.1} parent=11 // pred_region
        _
      $region24: #{dnn_forward.1} parent=11 // pred_fallthru
        _
      // Predicated region
      $region25: #{dnn_forward.1} parent=11 // pred_check
        %p193 = pneg %p122
      $region26: #{dnn_forward.1} parent=11 // pred_check_branch
        %195 = sbr.rel (%p193) target = $region28
      $region27: #{dnn_forward.1} parent=11 // pred_region
        _
      $region28: #{dnn_forward.1} parent=11 // pred_fallthru
        _
      // Predicated region
      $region29: #{dnn_forward.1} parent=11 // pred_check
        %p196 = pneg %p143
      $region30: #{dnn_forward.1} parent=11 // pred_check_branch
        %198 = sbr.rel (%p196) target = $region32
      $region31: #{dnn_forward.1} parent=11 // pred_region
        _
      $region32: #{dnn_forward.1} parent=11 // pred_fallthru
        _
    $region12: #{dnn_forward.1} parent=5 // pred_fallthru
      _
    %p199 = scmp.lt.s32.totalorder %s12, 2
    // Predicated region
    $region33: #{dnn_forward.1} parent=5 // pred_check
      %p200 = pneg %p199
    $region34: #{dnn_forward.1} parent=5 // pred_check_branch
      %202 = sbr.rel (%p200) target = $region36
    $region35: #{dnn_forward.1} parent=5 // pred_region
      // Predicated region
      $region37: #{dnn_forward.1} parent=35 // pred_check
        %p203 = pneg %p32
      $region38: #{dnn_forward.1} parent=35 // pred_check_branch
        %205 = sbr.rel (%p203) target = $region40
      $region39: #{dnn_forward.1} parent=35 // pred_region
        %p206 = scmp.lt.s32.totalorder %s12, 1
        %s207 = scalar_select %p206, %s12, 1
        %s208 = smul.addr %s207, 4
        %s209 = scalar_lea.vmem %s0, %s208
      $region40: #{dnn_forward.1} parent=35 // pred_fallthru
        _
    $region36: #{dnn_forward.1} parent=5 // pred_fallthru
      _
    %p210 = scmp.le.s32.totalorder 1, %s12
    %p211 = scmp.lt.s32.totalorder %s12, 3
    %p212 = pnand %p210, %p211
    %p213 = pneg %p212
    // Predicated region
    $region41: #{dnn_forward.1} parent=5 // pred_check
      _
    $region42: #{dnn_forward.1} parent=5 // pred_check_branch
      %215 = sbr.rel (%p212) target = $region44
    $region43: #{dnn_forward.1} parent=5 // pred_region
      %s216 = ssub.s32 %s12, 1
      %p217 = scmp.lt.s32.totalorder %s17, 1
      %s218 = scalar_select %p217, %s17, 1
      %s219 = smul.addr %s218, 4
      %s220 = scalar_lea.vmem %s0, %s219
      %p221 = pneg %p38
      %p222 = pneg %p35
      %p223 = pneg %p59
      %p224 = pneg %p56
      %p225 = pneg %p80
      %p226 = pneg %p77
      %p227 = pneg %p101
      %p228 = pneg %p98
      %p229 = pneg %p122
      %p230 = pneg %p119
      %p231 = pneg %p143
      %p232 = pneg %p140
      %p233 = pneg %p169
      %p234 = pneg %p166
      %p235 = scmp.lt.s32.totalorder %s17, 1
      %s236 = scalar_select %p235, %s17, 1
      %s237 = smul.addr %s236, 2
      %s238 = scalar_lea.vmem %s6, %s237
      %p239 = scmp.lt.s32.totalorder %s17, 1
      %s240 = scalar_select %p239, %s17, 1
      %s241 = smul.addr %s240, 4
      %s242 = scalar_lea.vmem %s0, %s241
      %p243 = scmp.lt.s32.totalorder %s17, 1
      %s244 = scalar_select %p243, %s17, 1
      %s245 = smul.addr %s244, 2
      %s246 = scalar_lea.vmem %s6, %s245
      %v248 = vld [vmem:[%s242] sm:$0xf]
      %v249 = vld [vmem:[%s1] sm:$0xf]
      %v250 = vld [vmem:[%s1 + $0x4] sm:$0xf]
      %v251 = vld [vmem:[%s1 + $0x8] sm:$0xf]
      %v252 = vld [vmem:[%s1 + $0xc] sm:$0x1]
      %v257 = vunpack.c.l.b16 %v249
      %v258 = vunpack.c.l.b16 %v250
      %v259 = vunpack.c.l.b16 %v251
      %v260 = vunpack.c.l.b16 %v252
      %v261 = vpack.c.b16 %v258, %v257
      %v262 = vpack.c.b16 %v260, %v259
      %vm263 = vcmask 56320
      %v265 = vsel %vm263, %v261, 0
      %v268 = vsel %vm263, %v262, 0
      %vm270 = vcmask 1042432
      %vm271 = vcmask 1043456
      %v272 = vsel %vm270, 4294967295, 65535
      %v273 = vsel %vm271, %v272, 0
      %v275 = vand.u32 %v248, %v273
      %277 = vmatpush.bf16.msra.mxu0 0
      %278 = vmatpush.bf16.msra.mxu0 0
      %279 = vmatpush.bf16.msra.mxu0 0
      %280 = vmatpush.bf16.msra.mxu0 0
      %281 = vmatpush.bf16.msra.mxu0 0
      %282 = vmatpush.bf16.msra.mxu0 0
      %283 = vmatpush.bf16.msra.mxu0 0
      %284 = vmatpush.bf16.msra.mxu0 %v275
      %285 = vmatmul.bf16.gmra.mxu0 %v265
      %v286 = vpop.f32.mrf.mxu0
      %v287 = vadd.f32 0.0, %v286
      %v288 = vpop.f32.mrf.mxu0
      %v289 = vadd.f32 0.0, %v288
      %290 = vmatmul.bf16.gmra.mxu0 %v268
      %v291 = vpop.f32.mrf.mxu0
      %v292 = vadd.f32 0.0, %v291
      %v293 = vpop.f32.mrf.mxu0
      %v294 = vadd.f32 0.0, %v293
      %295 = vdwg.mxu0
      %v296 = vpack.c.bf16 %v287, %v287
      %v297 = vpack.c.bf16 %v289, %v289
      %v298 = vpack.c.bf16 %v292, %v292
      %v299 = vpack.c.bf16 %v294, %v294
      %v300 = vunpack.c.l.bf16 %v296
      %v301 = vunpack.c.l.bf16 %v297
      %v302 = vunpack.c.l.bf16 %v298
      %v303 = vunpack.c.l.bf16 %v299
      %v304 = vmax.f32 %v300, 0.0
      %v305 = vmax.f32 %v301, 0.0
      %v306 = vmax.f32 %v302, 0.0
      %v307 = vmax.f32 %v303, 0.0
      %v308 = vpack.c.bf16 %v305, %v304
      %v309 = vpack.c.bf16 %v307, %v306
      %v310 = vld [vmem:[%s2] sm:$0xf]
      %v311 = vld [vmem:[%s2 + $0x4] sm:$0x1]
      %v314 = vunpack.c.l.b16 %v310
      %v315 = vunpack.c.l.b16 %v311
      %v316 = vpack.c.b16 %v315, %v314
      %vm317 = vcmask 203776
      %v319 = vsel %vm317, %v316, 0
      %vm321 = vcmask 1044480
      %v322 = vsel %vm271, 4294967295, 65535
      %v323 = vsel %vm321, %v322, 0
      %v325 = vand.u32 %v309, %v323
      %327 = vmatpush.bf16.msra.mxu0 0
      %328 = vmatpush.bf16.msra.mxu0 0
      %329 = vmatpush.bf16.msra.mxu0 0
      %330 = vmatpush.bf16.msra.mxu0 0
      %331 = vmatpush.bf16.msra.mxu0 0
      %332 = vmatpush.bf16.msra.mxu0 0
      %333 = vmatpush.bf16.msra.mxu0 %v325
      %334 = vmatpush.bf16.msra.mxu0 %v308
      %335 = vmatmul.bf16.gmra.mxu0 %v319
      %v336 = vpop.f32.mrf.mxu0
      %v337 = vadd.f32 0.0, %v336
      %v338 = vpop.f32.mrf.mxu0
      %v339 = vadd.f32 0.0, %v338
      %340 = vdwg.mxu0
      %v341 = vpack.c.bf16 %v337, %v337
      %v342 = vpack.c.bf16 %v339, %v339
      %v343 = vld [vmem:[%s3] sm:$0xf]
      %v344 = vld [vmem:[%s3 + $0x4] sm:$0x1]
      %346 = vset.pattern.permute.xlu0 0
      %347 = vperm.xlu0 %346, %v343
      %v348 = vpop.permute.xlu0 %347
      %v351 = vunpack.c.l.s4 839922192
      %v352 = vunpack.c.0.s8 %v351
      %v353 = vperm.slane %v348, %v352
      %355 = vset.pattern.permute.xlu0 0
      %356 = vperm.xlu0 %355, %v344
      %v357 = vpop.permute.xlu0 %356
      %v360 = vunpack.c.l.s4 839922192
      %v361 = vunpack.c.0.s8 %v360
      %v362 = vperm.slane %v357, %v361
      %v363 = vunpack.c.l.bf16 %v341
      %v364 = vunpack.c.l.bf16 %v342
      %v365 = vunpack.c.l.bf16 %v353
      %v366 = vunpack.c.l.bf16 %v362
      %v367 = vadd.f32 %v363, %v365
      %v368 = vadd.f32 %v364, %v366
      %v369 = vpack.c.bf16 %v367, %v367
      %v370 = vpack.c.bf16 %v368, %v368
      %v371 = vunpack.c.l.bf16 %v369
      %v372 = vunpack.c.l.bf16 %v370
      %v373 = vmax.f32 %v371, 0.0
      %v374 = vmax.f32 %v372, 0.0
      %v375 = vpack.c.bf16 %v374, %v373
      %v376 = vld [vmem:[%s4] sm:$0x3]
      %vm377 = vcmask 80896
      %v379 = vsel %vm377, %v376, 0
      %v382 = vsel %vm321, %v375, 0
      %384 = vmatpush.bf16.msra.mxu0 0
      %385 = vmatpush.bf16.msra.mxu0 0
      %386 = vmatpush.bf16.msra.mxu0 0
      %387 = vmatpush.bf16.msra.mxu0 0
      %388 = vmatpush.bf16.msra.mxu0 0
      %389 = vmatpush.bf16.msra.mxu0 0
      %390 = vmatpush.bf16.msra.mxu0 0
      %391 = vmatpush.bf16.msra.mxu0 %v382
      %392 = vmatmul.bf16.gmra.mxu0 %v379
      %v393 = vpop.f32.mrf.mxu0
      %v394 = vadd.f32 0.0, %v393
      %v395 = vpop.f32.mrf.mxu0
      %396 = vdwg.mxu0
      %v397 = vpack.c.bf16 %v394, %v394
      %v398 = vld [vmem:[%s5] sm:$0x3]
      %400 = vset.pattern.permute.xlu0 0
      %401 = vperm.xlu0 %400, %v398
      %v402 = vpop.permute.xlu0 %401
      %v405 = vunpack.c.l.s4 269488144
      %v406 = vunpack.c.0.s8 %v405
      %v407 = vperm.slane %v402, %v406
      %v408 = vunpack.c.l.bf16 %v397
      %v409 = vunpack.c.l.bf16 %v407
      %v410 = vadd.f32 %v408, %v409
      %v411 = vpack.c.bf16 %v410, %v410
      %412 = vst [vmem:[%s246] sm:$0x3] %v411
      %p413 = scmp.lt.s32.totalorder %s17, 1
      %s414 = scalar_select %p413, %s17, 1
      %s415 = smul.addr %s414, 2
      %s416 = scalar_lea.vmem %s6, %s415
      // Predicated region
      $region45: #{dnn_forward.1} parent=43 // pred_check
        %p417 = pneg %p166
      $region46: #{dnn_forward.1} parent=43 // pred_check_branch
        %419 = sbr.rel (%p417) target = $region48
      $region47: #{dnn_forward.1} parent=43 // pred_region
        _
      $region48: #{dnn_forward.1} parent=43 // pred_fallthru
        _
    $region44: #{dnn_forward.1} parent=5 // pred_fallthru
      _
    %p420 = scmp.le.s32.totalorder 2, %s12
    // Predicated region
    $region49: #{dnn_forward.1} parent=5 // pred_check
      %p421 = pneg %p420
    $region50: #{dnn_forward.1} parent=5 // pred_check_branch
      %423 = sbr.rel (%p421) target = $region52
    $region51: #{dnn_forward.1} parent=5 // pred_region
      %s424 = ssub.s32 %s12, 2
      // Predicated region
      $region53: #{dnn_forward.1} parent=51 // pred_check
        %p425 = pneg %p172
      $region54: #{dnn_forward.1} parent=51 // pred_check_branch
        %427 = sbr.rel (%p425) target = $region56
      $region55: #{dnn_forward.1} parent=51 // pred_region
        %p428 = scmp.lt.s32.totalorder %s18, 1
        %s429 = scalar_select %p428, %s18, 1
        %s430 = smul.addr %s429, 2
        %s431 = scalar_lea.vmem %s6, %s430
      $region56: #{dnn_forward.1} parent=51 // pred_fallthru
        _
    $region52: #{dnn_forward.1} parent=5 // pred_fallthru
      _
  $region6: #{dnn_forward.1} parent=0 // loop_footer
    %s16 = sadd.s32 1, %s12
  $region7: #{dnn_forward.1} parent=0 // loop_footer_branch
    %11 = sbr.rel target = $region3
  $region8: #{dnn_forward.1} parent=0 // loop_exit
    _

</llo_original>
